<compile_context>
chip_gen: v5e
topology: v5e:2x2
jax: 0.10.0
libtpu: 0.0.40
codegen_flags: <defaults>
</compile_context>

<pallas_src>
import jax
import jax.numpy as jnp
from jax.experimental import pallas as pl
from jax.experimental.pallas import tpu as pltpu


def _round_up(n, m):
    return ((n + m - 1) // m) * m


def _mlp_kernel(x_ref, w1_ref, b1_ref, w2_ref, b2_ref, w3_ref, b3_ref, o_ref):
    """One batch tile: (Dropout=id) -> Lin -> ReLU -> Lin -> ReLU -> Lin -> Tanh."""
    cd = w1_ref.dtype  # MXU compute dtype (f32 or bf16); accumulation is always f32
    x = x_ref[...]

    # Layer 1: Linear(input_size -> input_size/4) + ReLU  (bias/ReLU in f32)
    h1 = jnp.dot(x.astype(cd), w1_ref[...], preferred_element_type=jnp.float32) + b1_ref[...]
    h1 = jnp.maximum(h1, 0.0)

    # Layer 2: Linear(input_size/4 -> input_size/16) + ReLU
    h2 = jnp.dot(h1.astype(cd), w2_ref[...], preferred_element_type=jnp.float32) + b2_ref[...]
    h2 = jnp.maximum(h2, 0.0)

    # Layer 3: Linear(input_size/16 -> output_size_padded), then last == 'tanh'
    y = jnp.dot(h2.astype(cd), w3_ref[...], preferred_element_type=jnp.float32) + b3_ref[...]
    o_ref[...] = jnp.tanh(y).astype(o_ref.dtype)


def classifier_mlp_forward(x, params, *, matmul_dtype=jnp.float32,
                           vmem_budget_bytes=24 * 1024 * 1024):
    """x: [B, input_size] float32. params: dict of w1,b1,w2,b2,w3,b3 (f32)."""
    # Weights optionally cast to bf16 for the MXU (halves weight DMA on v6e/v7x);
    # biases and all elementwise math stay f32 (v5e VPU/EUP have no bf16).
    w1 = params["w1"].astype(matmul_dtype)
    w2 = params["w2"].astype(matmul_dtype)
    w3 = params["w3"].astype(matmul_dtype)
    b1 = params["b1"].astype(jnp.float32)
    b2 = params["b2"].astype(jnp.float32)
    b3 = params["b3"].astype(jnp.float32)

    B, in_size = x.shape
    h1_size, h2_size = w1.shape[1], w2.shape[1]
    out_size = w3.shape[1]

    # Lane-dense output slab: pad final layer's lane dim to a multiple of 128.
    # Padded weight/bias columns are zero => tanh(0) = 0; sliced off below.
    out_pad = _round_up(out_size, 128)
    if out_pad != out_size:
        w3 = jnp.pad(w3, ((0, 0), (0, out_pad - out_size)))
        b3 = jnp.pad(b3, ((0, 0), (0, out_pad - out_size)))

    # Batch tile: biggest multiple of 8 (<=512) whose double-buffered x/out tiles
    # + resident weights + f32 intermediates fit the VMEM budget.
    w_bytes = sum(int(a.size) * a.dtype.itemsize for a in (w1, b1, w2, b2, w3, b3))
    act = x.dtype.itemsize
    tb = 512
    while tb > 8:
        io_bytes = 2 * tb * (in_size * act + out_pad * 4)      # double-buffered in/out
        mid_bytes = tb * (h1_size + h2_size + out_pad) * 4      # f32 intermediates
        if w_bytes + io_bytes + mid_bytes <= vmem_budget_bytes:
            break
        tb //= 2
    tb = max(8, min(tb, _round_up(B, 8)))

    # Pad batch so the grid divides evenly; extra rows discarded at the end.
    b_pad = _round_up(B, tb)
    if b_pad != B:
        x = jnp.pad(x, ((0, b_pad - B), (0, 0)))

    grid = (b_pad // tb,)
    const = lambda shape: pl.BlockSpec(shape, lambda i, s=shape: (0,) * len(s))

    cost = pl.CostEstimate(
        flops=2 * B * (in_size * h1_size + h1_size * h2_size + h2_size * out_size),
        transcendentals=B * out_size,
        bytes_accessed=int(x.size) * act + w_bytes + B * out_size * 4,
    )

    out = pl.pallas_call(
        _mlp_kernel,
        out_shape=jax.ShapeDtypeStruct((b_pad, out_pad), jnp.float32),
        grid_spec=pltpu.PrefetchScalarGridSpec(
            num_scalar_prefetch=0,
            grid=grid,
            in_specs=[
                pl.BlockSpec((tb, in_size), lambda i: (i, 0)),   # x: tiled over batch
                const(w1.shape), const(b1.shape),                # weights/biases VMEM-resident
                const(w2.shape), const(b2.shape),
                const(w3.shape), const(b3.shape),
            ],
            out_specs=pl.BlockSpec((tb, out_pad), lambda i: (i, 0)),
        ),
        compiler_params=pltpu.CompilerParams(
            dimension_semantics=("parallel",),   # megacore-shard batch tiles on v7x
        ),
        cost_estimate=cost,
    )(x, w1, b1, w2, b2, w3, b3)

    return out[:B, :out_size]


def init_params(key, input_size, output_size):
    """Deterministic init mimicking PyTorch Linear default U[-1/sqrt(fan_in), +1/sqrt(fan_in)]."""
    h1 = input_size // 4
    h2 = input_size // 16
    dims = [(input_size, h1), (h1, h2), (h2, output_size)]
    params = {}
    for i, (fan_in, fan_out) in enumerate(dims, start=1):
        key, kw, kb = jax.random.split(key, 3)
        bound = 1.0 / (fan_in ** 0.5)
        params[f"w{i}"] = jax.random.uniform(
            kw, (fan_in, fan_out), jnp.float32, -bound, bound)
        params[f"b{i}"] = jax.random.uniform(
            kb, (1, fan_out), jnp.float32, -bound, bound)
    return params


def reference_forward(x, params):
    h1 = jnp.maximum(x @ params["w1"] + params["b1"], 0.0)
    h2 = jnp.maximum(h1 @ params["w2"] + params["b2"], 0.0)
    return jnp.tanh(h2 @ params["w3"] + params["b3"])


if __name__ == "__main__":
    input_size = 64      # must be divisible by 16 (module uses /4 and /16)
    output_size = 8
    batch = 8

    key = jax.random.PRNGKey(0)
    key, kx = jax.random.split(key)
    x = jax.random.normal(kx, (batch, input_size), jnp.float32)
    params = init_params(key, input_size, output_size)

    ref = reference_forward(x, params)

    # f32 MXU path: exact parity with the f32 reference.
    out_f32 = jax.block_until_ready(classifier_mlp_forward(x, params))
    assert out_f32.shape == (batch, output_size)
    assert jnp.allclose(out_f32, ref, atol=1e-5, rtol=1e-5), "f32 kernel mismatch vs JAX reference"

    # bf16-weight MXU fast path (v6e/v7x): bf16-aware tolerance.
    out_bf16 = jax.block_until_ready(
        classifier_mlp_forward(x, params, matmul_dtype=jnp.bfloat16))
    assert out_bf16.shape == (batch, output_size)
    assert jnp.allclose(out_bf16, ref, atol=5e-2, rtol=5e-2), "bf16 kernel mismatch vs JAX reference"

    print("KERNEL_OK")
</pallas_src>

<mosaic_0001>
module attributes {stable_mosaic.version = 11 : i64} {
  func.func @_mlp_kernel(%arg0: i32, %arg1: memref<8x64xf32, #tpu.memory_space<vmem>>, %arg2: memref<64x16xf32, #tpu.memory_space<vmem>>, %arg3: memref<1x16xf32, #tpu.memory_space<vmem>>, %arg4: memref<16x4xf32, #tpu.memory_space<vmem>>, %arg5: memref<1x4xf32, #tpu.memory_space<vmem>>, %arg6: memref<4x128xf32, #tpu.memory_space<vmem>>, %arg7: memref<1x128xf32, #tpu.memory_space<vmem>>, %arg8: memref<8x128xf32, #tpu.memory_space<vmem>>) attributes {dimension_semantics = [#tpu.dimension_semantics<parallel>], iteration_bounds = array<i64: 1>, scalar_prefetch = 0 : i64, scratch_operands = 0 : i64, tpu.core_type = #tpu.core_type<tc>, window_params = [{transform_indices = @transform_0, window_bounds = array<i64: 8, 64>}, {pipeline_mode = #tpu.pipeline_mode<synchronous>, transform_indices = @transform_1, window_bounds = array<i64: 64, 16>}, {pipeline_mode = #tpu.pipeline_mode<synchronous>, transform_indices = @transform_2, window_bounds = array<i64: 1, 16>}, {pipeline_mode = #tpu.pipeline_mode<synchronous>, transform_indices = @transform_3, window_bounds = array<i64: 16, 4>}, {pipeline_mode = #tpu.pipeline_mode<synchronous>, transform_indices = @transform_4, window_bounds = array<i64: 1, 4>}, {pipeline_mode = #tpu.pipeline_mode<synchronous>, transform_indices = @transform_5, window_bounds = array<i64: 4, 128>}, {pipeline_mode = #tpu.pipeline_mode<synchronous>, transform_indices = @transform_6, window_bounds = array<i64: 1, 128>}, {transform_indices = @transform_7, window_bounds = array<i64: 8, 128>}]} {
    %c0 = arith.constant 0 : index
    %c0_0 = arith.constant 0 : index
    %0 = vector.load %arg1[%c0, %c0_0] : memref<8x64xf32, #tpu.memory_space<vmem>>, vector<8x64xf32>
    %c0_1 = arith.constant 0 : index
    %c0_2 = arith.constant 0 : index
    %1 = vector.load %arg2[%c0_1, %c0_2] : memref<64x16xf32, #tpu.memory_space<vmem>>, vector<64x16xf32>
    %cst = arith.constant dense<0.000000e+00> : vector<8x16xf32>
    %2 = tpu.matmul %0, %1, %cst {dimension_numbers = #tpu.dot_dimension_numbers<[1], [0], [0], [1], [0, 0, 1, 1], [], []>} : vector<8x64xf32>, vector<64x16xf32>, vector<8x16xf32> -> vector<8x16xf32>
    %c0_3 = arith.constant 0 : index
    %c0_4 = arith.constant 0 : index
    %3 = vector.load %arg3[%c0_3, %c0_4] : memref<1x16xf32, #tpu.memory_space<vmem>>, vector<1x16xf32>
    %4 = vector.broadcast %3 : vector<1x16xf32> to vector<8x16xf32>
    %5 = arith.addf %2, %4 : vector<8x16xf32>
    %cst_5 = arith.constant 0.000000e+00 : f32
    %6 = vector.broadcast %cst_5 : f32 to vector<8x16xf32>
    %7 = arith.maximumf %5, %6 : vector<8x16xf32>
    %c0_6 = arith.constant 0 : index
    %c0_7 = arith.constant 0 : index
    %8 = vector.load %arg4[%c0_6, %c0_7] : memref<16x4xf32, #tpu.memory_space<vmem>>, vector<16x4xf32>
    %cst_8 = arith.constant dense<0.000000e+00> : vector<8x4xf32>
    %9 = tpu.matmul %7, %8, %cst_8 {dimension_numbers = #tpu.dot_dimension_numbers<[1], [0], [0], [1], [0, 0, 1, 1], [], []>} : vector<8x16xf32>, vector<16x4xf32>, vector<8x4xf32> -> vector<8x4xf32>
    %c0_9 = arith.constant 0 : index
    %c0_10 = arith.constant 0 : index
    %10 = vector.load %arg5[%c0_9, %c0_10] : memref<1x4xf32, #tpu.memory_space<vmem>>, vector<1x4xf32>
    %11 = vector.broadcast %10 : vector<1x4xf32> to vector<8x4xf32>
    %12 = arith.addf %9, %11 : vector<8x4xf32>
    %cst_11 = arith.constant 0.000000e+00 : f32
    %13 = vector.broadcast %cst_11 : f32 to vector<8x4xf32>
    %14 = arith.maximumf %12, %13 : vector<8x4xf32>
    %c0_12 = arith.constant 0 : index
    %c0_13 = arith.constant 0 : index
    %15 = vector.load %arg6[%c0_12, %c0_13] : memref<4x128xf32, #tpu.memory_space<vmem>>, vector<4x128xf32>
    %cst_14 = arith.constant dense<0.000000e+00> : vector<8x128xf32>
    %16 = tpu.matmul %14, %15, %cst_14 {dimension_numbers = #tpu.dot_dimension_numbers<[1], [0], [0], [1], [0, 0, 1, 1], [], []>} : vector<8x4xf32>, vector<4x128xf32>, vector<8x128xf32> -> vector<8x128xf32>
    %c0_15 = arith.constant 0 : index
    %c0_16 = arith.constant 0 : index
    %17 = vector.load %arg7[%c0_15, %c0_16] : memref<1x128xf32, #tpu.memory_space<vmem>>, vector<1x128xf32>
    %18 = vector.broadcast %17 : vector<1x128xf32> to vector<8x128xf32>
    %19 = arith.addf %16, %18 : vector<8x128xf32>
    %20 = math.tanh %19 : vector<8x128xf32>
    %c0_17 = arith.constant 0 : index
    %c0_18 = arith.constant 0 : index
    %21 = vector.load %arg8[%c0_17, %c0_18] : memref<8x128xf32, #tpu.memory_space<vmem>>, vector<8x128xf32>
    tpu.vector_store %arg8[%c0_17, %c0_18], %20 {strides = array<i32>} : memref<8x128xf32, #tpu.memory_space<vmem>>, vector<8x128xf32>,
    return
  }
  func.func @transform_0(%arg0: i32) -> (i32, i32) {
    %c0_i32 = arith.constant 0 : i32
    %c0_i32_0 = arith.constant 0 : i32
    return %arg0, %c0_i32 : i32, i32
  }
  func.func @transform_1(%arg0: i32) -> (i32, i32) {
    %c0_i32 = arith.constant 0 : i32
    %c0_i32_0 = arith.constant 0 : i32
    %c0_i32_1 = arith.constant 0 : i32
    return %c0_i32, %c0_i32_0 : i32, i32
  }
  func.func @transform_2(%arg0: i32) -> (i32, i32) {
    %c0_i32 = arith.constant 0 : i32
    %c0_i32_0 = arith.constant 0 : i32
    %c0_i32_1 = arith.constant 0 : i32
    return %c0_i32, %c0_i32_0 : i32, i32
  }
  func.func @transform_3(%arg0: i32) -> (i32, i32) {
    %c0_i32 = arith.constant 0 : i32
    %c0_i32_0 = arith.constant 0 : i32
    %c0_i32_1 = arith.constant 0 : i32
    return %c0_i32, %c0_i32_0 : i32, i32
  }
  func.func @transform_4(%arg0: i32) -> (i32, i32) {
    %c0_i32 = arith.constant 0 : i32
    %c0_i32_0 = arith.constant 0 : i32
    %c0_i32_1 = arith.constant 0 : i32
    return %c0_i32, %c0_i32_0 : i32, i32
  }
  func.func @transform_5(%arg0: i32) -> (i32, i32) {
    %c0_i32 = arith.constant 0 : i32
    %c0_i32_0 = arith.constant 0 : i32
    %c0_i32_1 = arith.constant 0 : i32
    return %c0_i32, %c0_i32_0 : i32, i32
  }
  func.func @transform_6(%arg0: i32) -> (i32, i32) {
    %c0_i32 = arith.constant 0 : i32
    %c0_i32_0 = arith.constant 0 : i32
    %c0_i32_1 = arith.constant 0 : i32
    return %c0_i32, %c0_i32_0 : i32, i32
  }
  func.func @transform_7(%arg0: i32) -> (i32, i32) {
    %c0_i32 = arith.constant 0 : i32
    %c0_i32_0 = arith.constant 0 : i32
    return %arg0, %c0_i32 : i32, i32
  }
}

</mosaic_0001>

<llo_original>
// kernel: tpu_custom_call.1
$region0: #{tpu_custom_call.1}
  #allocation0 [shape = 'u32[]', space=smem, size = 0x4, offset = 0x4, fixed_abs, tag = 'smem constant byte address 0x4 - core index']
  #allocation1 [shape = 'u32[72,128]{1,0:T(1,128)}', space=vmem, size = 0x9000, scoped, tag = 'internal scratch']
  %s0 = inlined_call_operand.vmem [shape: f32[8,64], index: 0, kind: input, shape index: {}]
  %s1 = inlined_call_operand.vmem [shape: f32[64,16], index: 1, kind: input, shape index: {}]
  %s2 = inlined_call_operand.vmem [shape: f32[1,16], index: 2, kind: input, shape index: {}]
  %s3 = inlined_call_operand.vmem [shape: f32[16,4], index: 3, kind: input, shape index: {}]
  %s4 = inlined_call_operand.vmem [shape: f32[1,4], index: 4, kind: input, shape index: {}]
  %s5 = inlined_call_operand.vmem [shape: f32[4,128], index: 5, kind: input, shape index: {}]
  %s6 = inlined_call_operand.vmem [shape: f32[1,128], index: 6, kind: input, shape index: {}]
  %s7 = inlined_call_operand.hbm [shape: f32[8,128], index: 7, kind: output, shape index: {}]
  %s8 = sld [smem:[#allocation0]]
  $region38: #{tpu_custom_call.1} parent=0
    _
  %s10 = ssub.s32 1, %s8
  %s11 = scalar_select 0, %s10, %s8
  $region1: #{tpu_custom_call.1} parent=0
    #allocation2 [shape = 'u8[4096]{0}', space=vmem, size = 0x1000, scoped, tag = 'output window, operand 0, single buffered']
    #allocation3 [shape = 's32[1]{0}', space=sflag, size = 0x4, scoped, tag = 'scoped memory for tpu_custom_call.1']
    %12 = vsyncpa [#allocation3], 0
    // Predicated region
    $region2: #{tpu_custom_call.1} parent=1 // pred_check
      _
    $region3: #{tpu_custom_call.1} parent=1 // pred_check_branch
      %14 = sbr.rel (0) target = $region5
    $region4: #{tpu_custom_call.1} parent=1 // pred_region
      _
    $region5: #{tpu_custom_call.1} parent=1 // pred_fallthru
      _
    // Predicated region
    $region6: #{tpu_custom_call.1} parent=1 // pred_check
      _
    $region7: #{tpu_custom_call.1} parent=1 // pred_check_branch
      %16 = sbr.rel (0) target = $region9
    $region8: #{tpu_custom_call.1} parent=1 // pred_region
      _
    $region9: #{tpu_custom_call.1} parent=1 // pred_fallthru
      _
    // Predicated region
    $region10: #{tpu_custom_call.1} parent=1 // pred_check
      _
    $region11: #{tpu_custom_call.1} parent=1 // pred_check_branch
      %18 = sbr.rel (0) target = $region13
    $region12: #{tpu_custom_call.1} parent=1 // pred_region
      _
    $region13: #{tpu_custom_call.1} parent=1 // pred_fallthru
      _
    // Predicated region
    $region14: #{tpu_custom_call.1} parent=1 // pred_check
      _
    $region15: #{tpu_custom_call.1} parent=1 // pred_check_branch
      %20 = sbr.rel (0) target = $region17
    $region16: #{tpu_custom_call.1} parent=1 // pred_region
      _
    $region17: #{tpu_custom_call.1} parent=1 // pred_fallthru
      _
    // Predicated region
    $region18: #{tpu_custom_call.1} parent=1 // pred_check
      _
    $region19: #{tpu_custom_call.1} parent=1 // pred_check_branch
      %22 = sbr.rel (0) target = $region21
    $region20: #{tpu_custom_call.1} parent=1 // pred_region
      _
    $region21: #{tpu_custom_call.1} parent=1 // pred_fallthru
      _
    // Predicated region
    $region22: #{tpu_custom_call.1} parent=1 // pred_check
      _
    $region23: #{tpu_custom_call.1} parent=1 // pred_check_branch
      %24 = sbr.rel (0) target = $region25
    $region24: #{tpu_custom_call.1} parent=1 // pred_region
      _
    $region25: #{tpu_custom_call.1} parent=1 // pred_fallthru
      _
    // Predicated region
    $region26: #{tpu_custom_call.1} parent=1 // pred_check
      _
    $region27: #{tpu_custom_call.1} parent=1 // pred_check_branch
      %26 = sbr.rel (0) target = $region29
    $region28: #{tpu_custom_call.1} parent=1 // pred_region
      _
    $region29: #{tpu_custom_call.1} parent=1 // pred_fallthru
      _
    %v27 = vld [vmem:[%s0] sm:$0xff]
    %v28 = vld [vmem:[%s1] sm:$0xff]
    %v29 = vld [vmem:[%s1 + $0x8] sm:$0xff]
    %v30 = vld [vmem:[%s1 + $0x10] sm:$0xff]
    %v31 = vld [vmem:[%s1 + $0x18] sm:$0xff]
    %v32 = vld [vmem:[%s1 + $0x20] sm:$0xff]
    %v33 = vld [vmem:[%s1 + $0x28] sm:$0xff]
    %v34 = vld [vmem:[%s1 + $0x30] sm:$0xff]
    %v35 = vld [vmem:[%s1 + $0x38] sm:$0xff]
    %v36 = vld [vmem:[%s2] sm:$0x1]
    %v38 = vperm.slane %v36, 0
    %vm40 = vcmask 523264
    %v42 = vsel %vm40, %v27, 0
    %44 = vmatpush.msra.mxu0 0.0
    %45 = vmatpush.msra.mxu0 0.0
    %46 = vmatpush.msra.mxu0 0.0
    %47 = vmatpush.msra.mxu0 0.0
    %48 = vmatpush.msra.mxu0 0.0
    %49 = vmatpush.msra.mxu0 0.0
    %50 = vmatpush.msra.mxu0 0.0
    %51 = vmatpush.msra.mxu0 0.0
    %52 = vmatpush.msra.mxu0 %v35
    %53 = vmatpush.msra.mxu0 %v34
    %54 = vmatpush.msra.mxu0 %v33
    %55 = vmatpush.msra.mxu0 %v32
    %56 = vmatpush.msra.mxu0 %v31
    %57 = vmatpush.msra.mxu0 %v30
    %58 = vmatpush.msra.mxu0 %v29
    %59 = vmatpush.msra.mxu0 %v28
    %60 = vmatmul.f32.gmra.mxu0 %v42
    %v61 = vpop.f32.mrf.mxu0
    %v62 = vadd.f32 %v38, %v61
    %63 = vdwg.mxu0
    %v64 = vmax.f32 %v62, 0.0
    %v65 = vld [vmem:[%s3] sm:$0xff]
    %v66 = vld [vmem:[%s3 + $0x8] sm:$0xff]
    %v67 = vld [vmem:[%s4] sm:$0x1]
    %v69 = vperm.slane %v67, 0
    %vm71 = vcmask 130048
    %v73 = vsel %vm71, %v64, 0
    %75 = vmatpush.msra.mxu0 0.0
    %76 = vmatpush.msra.mxu0 0.0
    %77 = vmatpush.msra.mxu0 0.0
    %78 = vmatpush.msra.mxu0 0.0
    %79 = vmatpush.msra.mxu0 0.0
    %80 = vmatpush.msra.mxu0 0.0
    %81 = vmatpush.msra.mxu0 0.0
    %82 = vmatpush.msra.mxu0 0.0
    %83 = vmatpush.msra.mxu0 0.0
    %84 = vmatpush.msra.mxu0 0.0
    %85 = vmatpush.msra.mxu0 0.0
    %86 = vmatpush.msra.mxu0 0.0
    %87 = vmatpush.msra.mxu0 0.0
    %88 = vmatpush.msra.mxu0 0.0
    %89 = vmatpush.msra.mxu0 %v66
    %90 = vmatpush.msra.mxu0 %v65
    %91 = vmatmul.f32.gmra.mxu0 %v73
    %v92 = vpop.f32.mrf.mxu0
    %v93 = vadd.f32 %v69, %v92
    %94 = vdwg.mxu0
    %v95 = vmax.f32 %v93, 0.0
    %v96 = vld [vmem:[%s5] sm:$0xf]
    %v97 = vld [vmem:[%s6] sm:$0x1]
    %v99 = vperm.slane %v97, 0
    %vm101 = vcmask 31744
    %v103 = vsel %vm101, %v95, 0
    %vm105 = vcmask 1043456
    %v107 = vsel %vm105, %v96, 0
    %109 = vmatpush.msra.mxu0 0.0
    %110 = vmatpush.msra.mxu0 0.0
    %111 = vmatpush.msra.mxu0 0.0
    %112 = vmatpush.msra.mxu0 0.0
    %113 = vmatpush.msra.mxu0 0.0
    %114 = vmatpush.msra.mxu0 0.0
    %115 = vmatpush.msra.mxu0 0.0
    %116 = vmatpush.msra.mxu0 0.0
    %117 = vmatpush.msra.mxu0 0.0
    %118 = vmatpush.msra.mxu0 0.0
    %119 = vmatpush.msra.mxu0 0.0
    %120 = vmatpush.msra.mxu0 0.0
    %121 = vmatpush.msra.mxu0 0.0
    %122 = vmatpush.msra.mxu0 0.0
    %123 = vmatpush.msra.mxu0 0.0
    %124 = vmatpush.msra.mxu0 %v107
    %125 = vmatmul.f32.gmra.mxu0 %v103
    %v126 = vpop.f32.mrf.mxu0
    %v127 = vadd.f32 %v99, %v126
    %128 = vdwg.mxu0
    %v129 = vtanh.pop %v127
    %130 = vst [vmem:[#allocation2] sm:$0xff] %v129
    // Predicated region
    $region30: #{tpu_custom_call.1} parent=1 // pred_check
      _
    $region31: #{tpu_custom_call.1} parent=1 // pred_check_branch
      %132 = sbr.rel (0) target = $region33
    $region32: #{tpu_custom_call.1} parent=1 // pred_region
      %134 = vsyncadd [#allocation3], 0
      %s136 = sshll.u32 [#allocation2], 4
      %s137 = int_to_ptr.vmem [resolvable:$true] %s136
      %s138 = sshll.u32 %s7, 4
      %s139 = int_to_ptr.hbm [resolvable:$true] %s138
      %141 = dma.vmem_to_hbm [thread:$0]  %s137, 128, %s139, [#allocation3]
    $region33: #{tpu_custom_call.1} parent=1 // pred_fallthru
      _
    // Predicated region
    $region34: #{tpu_custom_call.1} parent=1 // pred_check
      _
    $region35: #{tpu_custom_call.1} parent=1 // pred_check_branch
      %143 = sbr.rel (0) target = $region37
    $region36: #{tpu_custom_call.1} parent=1 // pred_region
      %145 = dma.done [#allocation3], 128
    $region37: #{tpu_custom_call.1} parent=1 // pred_fallthru
      _
    %146 = vsyncpa [#allocation3], 1

</llo_original>
